<compile_context>
chip_gen: v5e
topology: v5e:2x2
jax: 0.10.0
libtpu: 0.0.40
codegen_flags: <defaults>
</compile_context>

<pallas_src>
import jax
import jax.numpy as jnp
from jax import lax
from jax.experimental import pallas as pl
from jax.experimental.pallas import tpu as pltpu


def _round_up(a: int, b: int) -> int:
    return ((a + b - 1) // b) * b


def lora_kernel(x_ref, w_ref, bias_ref, a_ref, b_ref, o_ref, acc_ref, xa_ref):
    """One (i, j, k) grid step of out = x @ W.T + bias + (x @ A.T) @ B.T."""
    k = pl.program_id(2)
    nk = pl.num_programs(2)

    # Init accumulators on the first K step; fold the bias add in for free.
    @pl.when(k == 0)
    def _():
        acc_ref[...] = jnp.broadcast_to(
            bias_ref[...].astype(jnp.float32), acc_ref.shape)
        xa_ref[...] = jnp.zeros_like(xa_ref)

    x = x_ref[...]                                    # [tm, tk] bf16

    # Base Linear: x @ W.T  (W tile is [tn, tk]; contract over last dims).
    acc_ref[...] += lax.dot_general(
        x, w_ref[...],
        dimension_numbers=(((1,), (1,)), ((), ())),
        preferred_element_type=jnp.float32)           # [tm, tn]

    # LoRA down-projection: x @ A.T  (A tile is [Rp, tk]), accumulated over K.
    xa_ref[...] += lax.dot_general(
        x, a_ref[...],
        dimension_numbers=(((1,), (1,)), ((), ())),
        preferred_element_type=jnp.float32)           # [tm, Rp]

    # Epilogue on the last K step: LoRA up-projection + single writeback.
    @pl.when(k == nk - 1)
    def _():
        lora = lax.dot_general(
            xa_ref[...].astype(b_ref.dtype), b_ref[...],
            dimension_numbers=(((1,), (1,)), ((), ())),
            preferred_element_type=jnp.float32)       # [tm, tn]
        o_ref[...] = (acc_ref[...] + lora).astype(o_ref.dtype)


def lora_forward(x, W, bias, A, B, *, tm=256, tn=256, tk=512):
    """out = x @ W.T + bias + (x @ A.T) @ B.T.

    x: [M, K]; W: [N, K]; bias: [N]; A: [R, K]; B: [N, R]  ->  [M, N]
    """
    M, K = x.shape
    N, _ = W.shape
    R = A.shape[0]
    out_dtype = x.dtype

    # Effective tile sizes: (8, 128)-aligned, clamped to the (padded) problem.
    tm = min(tm, _round_up(M, 8))
    tn = min(tn, _round_up(N, 128))
    tk = min(tk, _round_up(K, 128))
    Rp = _round_up(R, 128)                  # lane-dense rank (zero-padded)

    Mp, Np, Kp = _round_up(M, tm), _round_up(N, tn), _round_up(K, tk)

    # Zero-pad to tile multiples; cast matmul operands to bf16 (f32 acc inside).
    xp = jnp.zeros((Mp, Kp), jnp.bfloat16).at[:M, :K].set(x.astype(jnp.bfloat16))
    Wp = jnp.zeros((Np, Kp), jnp.bfloat16).at[:N, :K].set(W.astype(jnp.bfloat16))
    Ap = jnp.zeros((Rp, Kp), jnp.bfloat16).at[:R, :K].set(A.astype(jnp.bfloat16))
    Bp = jnp.zeros((Np, Rp), jnp.bfloat16).at[:N, :R].set(B.astype(jnp.bfloat16))
    biasp = jnp.zeros((1, Np), jnp.float32).at[0, :N].set(bias.astype(jnp.float32))

    grid = (Mp // tm, Np // tn, Kp // tk)

    flops = 2 * Mp * Np * Kp + 2 * Mp * Rp * Kp + 2 * Mp * Rp * Np
    bytes_accessed = (
        (xp.size + Wp.size + Ap.size + Bp.size) * 2     # bf16 inputs
        + biasp.size * 4
        + Mp * Np * jnp.dtype(out_dtype).itemsize)

    out = pl.pallas_call(
        lora_kernel,
        out_shape=jax.ShapeDtypeStruct((Mp, Np), out_dtype),
        grid_spec=pltpu.PrefetchScalarGridSpec(
            num_scalar_prefetch=0,
            grid=grid,
            in_specs=[
                pl.BlockSpec((tm, tk), lambda i, j, k: (i, k)),   # x
                pl.BlockSpec((tn, tk), lambda i, j, k: (j, k)),   # W (native [N,K])
                pl.BlockSpec((1, tn), lambda i, j, k: (0, j)),    # bias
                pl.BlockSpec((Rp, tk), lambda i, j, k: (0, k)),   # A (native [R,K], padded)
                pl.BlockSpec((tn, Rp), lambda i, j, k: (j, 0)),   # B (native [N,R], padded)
            ],
            out_specs=pl.BlockSpec((tm, tn), lambda i, j, k: (i, j)),
            scratch_shapes=[
                pltpu.VMEM((tm, tn), jnp.float32),   # f32 output accumulator
                pltpu.VMEM((tm, Rp), jnp.float32),   # f32 (x @ A.T) accumulator
            ],
        ),
        compiler_params=pltpu.CompilerParams(
            dimension_semantics=("parallel", "parallel", "arbitrary")),
        cost_estimate=pl.CostEstimate(
            flops=flops, transcendentals=0, bytes_accessed=bytes_accessed),
    )(xp, Wp, biasp, Ap, Bp)

    return out[:M, :N]


if __name__ == "__main__":
    # Shapes consistent with nn.Linear(in_features=32, out_features=32)
    # wrapped by LoRA(alpha=0.5, rank=4), batch of 8 rows.
    M, K, N, R = 8, 32, 32, 4
    alpha = 0.5

    key = jax.random.PRNGKey(0)
    kx, kw, kb, ka, kB = jax.random.split(key, 5)

    x = jax.random.normal(kx, (M, K), dtype=jnp.float32)
    W = jax.random.normal(kw, (N, K), dtype=jnp.float32) * 0.1    # Linear weight
    bias = jax.random.normal(kb, (N,), dtype=jnp.float32) * 0.1   # Linear bias
    A = jax.random.normal(ka, (R, K), dtype=jnp.float32) * alpha  # lora_A
    B = jax.random.normal(kB, (N, R), dtype=jnp.float32) * alpha  # lora_B

    out = jax.block_until_ready(lora_forward(x, W, bias, A, B))
    assert out.shape == (M, N)

    # bf16-consistent reference (same casts as the kernel, f32 accumulation).
    xb, Wb = x.astype(jnp.bfloat16), W.astype(jnp.bfloat16)
    Ab, Bb = A.astype(jnp.bfloat16), B.astype(jnp.bfloat16)
    base = jnp.dot(xb, Wb.T, preferred_element_type=jnp.float32) + bias
    xa = jnp.dot(xb, Ab.T, preferred_element_type=jnp.float32)
    ref_bf16 = base + jnp.dot(xa.astype(jnp.bfloat16), Bb.T,
                              preferred_element_type=jnp.float32)
    err_bf16 = jnp.max(jnp.abs(out - ref_bf16.astype(out.dtype)))
    assert jnp.allclose(out, ref_bf16.astype(out.dtype), atol=2e-2, rtol=2e-2), (
        f"max abs err vs bf16 reference: {err_bf16}")

    # Loose sanity check vs the full-f32 PyTorch-equivalent math.
    ref_f32 = x @ W.T + bias + (x @ A.T) @ B.T
    err_f32 = jnp.max(jnp.abs(out - ref_f32))
    assert jnp.allclose(out, ref_f32, atol=2.5e-1, rtol=1e-1), (
        f"max abs err vs f32 reference: {err_f32}")

    print("KERNEL_OK")
</pallas_src>

<mosaic_0001>
module attributes {stable_mosaic.version = 11 : i64} {
  func.func @lora_kernel(%arg0: i32, %arg1: i32, %arg2: i32, %arg3: memref<8x128xbf16, #tpu.memory_space<vmem>>, %arg4: memref<128x128xbf16, #tpu.memory_space<vmem>>, %arg5: memref<1x128xf32, #tpu.memory_space<vmem>>, %arg6: memref<128x128xbf16, #tpu.memory_space<vmem>>, %arg7: memref<128x128xbf16, #tpu.memory_space<vmem>>, %arg8: memref<8x128xf32, #tpu.memory_space<vmem>>, %arg9: memref<8x128xf32, #tpu.memory_space<vmem>>, %arg10: memref<8x128xf32, #tpu.memory_space<vmem>>) attributes {dimension_semantics = [#tpu.dimension_semantics<parallel>, #tpu.dimension_semantics<parallel>, #tpu.dimension_semantics<arbitrary>], iteration_bounds = array<i64: 1, 1, 1>, scalar_prefetch = 0 : i64, scratch_operands = 2 : i64, tpu.core_type = #tpu.core_type<tc>, window_params = [{transform_indices = @transform_0, window_bounds = array<i64: 8, 128>}, {transform_indices = @transform_1, window_bounds = array<i64: 128, 128>}, {transform_indices = @transform_2, window_bounds = array<i64: 1, 128>}, {transform_indices = @transform_3, window_bounds = array<i64: 128, 128>}, {transform_indices = @transform_4, window_bounds = array<i64: 128, 128>}, {transform_indices = @transform_5, window_bounds = array<i64: 8, 128>}]} {
    %c0_i32 = arith.constant 0 : i32
    %0 = arith.cmpi eq, %arg2, %c0_i32 : i32
    %1 = arith.extui %0 : i1 to i32
    %c0_i32_0 = arith.constant 0 : i32
    %2 = arith.cmpi ne, %1, %c0_i32_0 : i32
    scf.if %2 {
      %c0_17 = arith.constant 0 : index
      %c0_18 = arith.constant 0 : index
      %17 = vector.load %arg5[%c0_17, %c0_18] : memref<1x128xf32, #tpu.memory_space<vmem>>, vector<1x128xf32>
      %18 = vector.shape_cast %17 : vector<1x128xf32> to vector<1x128xf32>
      %19 = vector.broadcast %18 : vector<1x128xf32> to vector<8x128xf32>
      %c0_19 = arith.constant 0 : index
      %c0_20 = arith.constant 0 : index
      %20 = vector.load %arg9[%c0_19, %c0_20] : memref<8x128xf32, #tpu.memory_space<vmem>>, vector<8x128xf32>
      tpu.vector_store %arg9[%c0_19, %c0_20], %19 {strides = array<i32>} : memref<8x128xf32, #tpu.memory_space<vmem>>, vector<8x128xf32>,
      %cst_21 = arith.constant 0.000000e+00 : f32
      %21 = vector.broadcast %cst_21 : f32 to vector<8x128xf32>
      %c0_22 = arith.constant 0 : index
      %c0_23 = arith.constant 0 : index
      %22 = vector.load %arg10[%c0_22, %c0_23] : memref<8x128xf32, #tpu.memory_space<vmem>>, vector<8x128xf32>
      tpu.vector_store %arg10[%c0_22, %c0_23], %21 {strides = array<i32>} : memref<8x128xf32, #tpu.memory_space<vmem>>, vector<8x128xf32>,
    } else {
    }
    %c0 = arith.constant 0 : index
    %c0_1 = arith.constant 0 : index
    %3 = vector.load %arg3[%c0, %c0_1] : memref<8x128xbf16, #tpu.memory_space<vmem>>, vector<8x128xbf16>
    %c0_2 = arith.constant 0 : index
    %c0_3 = arith.constant 0 : index
    %4 = vector.load %arg9[%c0_2, %c0_3] : memref<8x128xf32, #tpu.memory_space<vmem>>, vector<8x128xf32>
    %c0_4 = arith.constant 0 : index
    %c0_5 = arith.constant 0 : index
    %5 = vector.load %arg4[%c0_4, %c0_5] : memref<128x128xbf16, #tpu.memory_space<vmem>>, vector<128x128xbf16>
    %cst = arith.constant dense<0.000000e+00> : vector<8x128xf32>
    %6 = tpu.matmul %3, %5, %cst {dimension_numbers = #tpu.dot_dimension_numbers<[1], [1], [0], [0], [0, 0, 1, 0], [], []>} : vector<8x128xbf16>, vector<128x128xbf16>, vector<8x128xf32> -> vector<8x128xf32>
    %7 = arith.addf %4, %6 : vector<8x128xf32>
    %c0_6 = arith.constant 0 : index
    %c0_7 = arith.constant 0 : index
    %8 = vector.load %arg9[%c0_6, %c0_7] : memref<8x128xf32, #tpu.memory_space<vmem>>, vector<8x128xf32>
    tpu.vector_store %arg9[%c0_6, %c0_7], %7 {strides = array<i32>} : memref<8x128xf32, #tpu.memory_space<vmem>>, vector<8x128xf32>,
    %c0_8 = arith.constant 0 : index
    %c0_9 = arith.constant 0 : index
    %9 = vector.load %arg10[%c0_8, %c0_9] : memref<8x128xf32, #tpu.memory_space<vmem>>, vector<8x128xf32>
    %c0_10 = arith.constant 0 : index
    %c0_11 = arith.constant 0 : index
    %10 = vector.load %arg6[%c0_10, %c0_11] : memref<128x128xbf16, #tpu.memory_space<vmem>>, vector<128x128xbf16>
    %cst_12 = arith.constant dense<0.000000e+00> : vector<8x128xf32>
    %11 = tpu.matmul %3, %10, %cst_12 {dimension_numbers = #tpu.dot_dimension_numbers<[1], [1], [0], [0], [0, 0, 1, 0], [], []>} : vector<8x128xbf16>, vector<128x128xbf16>, vector<8x128xf32> -> vector<8x128xf32>
    %12 = arith.addf %9, %11 : vector<8x128xf32>
    %c0_13 = arith.constant 0 : index
    %c0_14 = arith.constant 0 : index
    %13 = vector.load %arg10[%c0_13, %c0_14] : memref<8x128xf32, #tpu.memory_space<vmem>>, vector<8x128xf32>
    tpu.vector_store %arg10[%c0_13, %c0_14], %12 {strides = array<i32>} : memref<8x128xf32, #tpu.memory_space<vmem>>, vector<8x128xf32>,
    %c0_i32_15 = arith.constant 0 : i32
    %14 = arith.cmpi eq, %arg2, %c0_i32_15 : i32
    %15 = arith.extui %14 : i1 to i32
    %c0_i32_16 = arith.constant 0 : i32
    %16 = arith.cmpi ne, %15, %c0_i32_16 : i32
    scf.if %16 {
      %c0_17 = arith.constant 0 : index
      %c0_18 = arith.constant 0 : index
      %17 = vector.load %arg10[%c0_17, %c0_18] : memref<8x128xf32, #tpu.memory_space<vmem>>, vector<8x128xf32>
      %18 = arith.truncf %17 : vector<8x128xf32> to vector<8x128xbf16>
      %c0_19 = arith.constant 0 : index
      %c0_20 = arith.constant 0 : index
      %19 = vector.load %arg7[%c0_19, %c0_20] : memref<128x128xbf16, #tpu.memory_space<vmem>>, vector<128x128xbf16>
      %cst_21 = arith.constant dense<0.000000e+00> : vector<8x128xf32>
      %20 = tpu.matmul %18, %19, %cst_21 {dimension_numbers = #tpu.dot_dimension_numbers<[1], [1], [0], [0], [0, 0, 1, 0], [], []>} : vector<8x128xbf16>, vector<128x128xbf16>, vector<8x128xf32> -> vector<8x128xf32>
      %c0_22 = arith.constant 0 : index
      %c0_23 = arith.constant 0 : index
      %21 = vector.load %arg9[%c0_22, %c0_23] : memref<8x128xf32, #tpu.memory_space<vmem>>, vector<8x128xf32>
      %22 = arith.addf %21, %20 : vector<8x128xf32>
      %c0_24 = arith.constant 0 : index
      %c0_25 = arith.constant 0 : index
      %23 = vector.load %arg8[%c0_24, %c0_25] : memref<8x128xf32, #tpu.memory_space<vmem>>, vector<8x128xf32>
      tpu.vector_store %arg8[%c0_24, %c0_25], %22 {strides = array<i32>} : memref<8x128xf32, #tpu.memory_space<vmem>>, vector<8x128xf32>,
    } else {
    }
    return
  }
  func.func @transform_0(%arg0: i32, %arg1: i32, %arg2: i32) -> (i32, i32) {
    %c0_i32 = arith.constant 0 : i32
    return %arg0, %arg2 : i32, i32
  }
  func.func @transform_1(%arg0: i32, %arg1: i32, %arg2: i32) -> (i32, i32) {
    %c0_i32 = arith.constant 0 : i32
    return %arg1, %arg2 : i32, i32
  }
  func.func @transform_2(%arg0: i32, %arg1: i32, %arg2: i32) -> (i32, i32) {
    %c0_i32 = arith.constant 0 : i32
    %c0_i32_0 = arith.constant 0 : i32
    return %c0_i32, %arg1 : i32, i32
  }
  func.func @transform_3(%arg0: i32, %arg1: i32, %arg2: i32) -> (i32, i32) {
    %c0_i32 = arith.constant 0 : i32
    %c0_i32_0 = arith.constant 0 : i32
    return %c0_i32, %arg2 : i32, i32
  }
  func.func @transform_4(%arg0: i32, %arg1: i32, %arg2: i32) -> (i32, i32) {
    %c0_i32 = arith.constant 0 : i32
    %c0_i32_0 = arith.constant 0 : i32
    return %arg1, %c0_i32 : i32, i32
  }
  func.func @transform_5(%arg0: i32, %arg1: i32, %arg2: i32) -> (i32, i32) {
    %c0_i32 = arith.constant 0 : i32
    return %arg0, %arg1 : i32, i32
  }
}

</mosaic_0001>

<llo_original>
// kernel: tpu_custom_call.1
$region0: #{tpu_custom_call.1}
  #allocation0 [shape = 'u32[]', space=smem, size = 0x4, offset = 0x4, fixed_abs, tag = 'smem constant byte address 0x4 - core index']
  #allocation1 [shape = 'u32[72,128]{1,0:T(1,128)}', space=vmem, size = 0x9000, scoped, tag = 'internal scratch']
  #allocation2 [shape = 'f32[8,128]{1,0:T(8,128)}', space=vmem, size = 0x1000, scoped, tag = 'scratch operand']
  #allocation3 [shape = 'f32[8,128]{1,0:T(8,128)}', space=vmem, size = 0x1000, scoped, tag = 'scratch operand']
  %s0 = inlined_call_operand.hbm [shape: bf16[8,128], index: 0, kind: input, shape index: {}]
  %s1 = inlined_call_operand.hbm [shape: bf16[128,128], index: 1, kind: input, shape index: {}]
  %s2 = inlined_call_operand.vmem [shape: f32[1,128], index: 2, kind: input, shape index: {}]
  %s3 = inlined_call_operand.hbm [shape: bf16[128,128], index: 3, kind: input, shape index: {}]
  %s4 = inlined_call_operand.hbm [shape: bf16[128,128], index: 4, kind: input, shape index: {}]
  %s5 = inlined_call_operand.hbm [shape: f32[8,128], index: 5, kind: output, shape index: {}]
  %s6 = sld [smem:[#allocation0]]
  $region54: #{tpu_custom_call.1} parent=0
    _
  %s8 = ssub.s32 1, %s6
  %s9 = scalar_select 0, %s8, %s6
  $region1: #{tpu_custom_call.1} parent=0
    #allocation4 [shape = 'u8[2048]{0}', space=vmem, size = 0x800, scoped, tag = 'input window, operand 0, single buffered']
    #allocation5 [shape = 's32[1]{0}', space=sflag, size = 0x4, scoped, tag = 'scoped memory for tpu_custom_call.1']
    #allocation6 [shape = 's32[1]{0}', space=sflag, size = 0x4, scoped, tag = 'scoped memory for tpu_custom_call.1']
    #allocation7 [shape = 'u8[32768]{0}', space=vmem, size = 0x8000, scoped, tag = 'input window, operand 1, single buffered']
    #allocation8 [shape = 's32[1]{0}', space=sflag, size = 0x4, scoped, tag = 'scoped memory for tpu_custom_call.1']
    #allocation9 [shape = 'u8[32768]{0}', space=vmem, size = 0x8000, scoped, tag = 'input window, operand 3, single buffered']
    #allocation10 [shape = 'u8[32768]{0}', space=vmem, size = 0x8000, scoped, tag = 'input window, operand 4, single buffered']
    #allocation11 [shape = 's32[1]{0}', space=sflag, size = 0x4, scoped, tag = 'scoped memory for tpu_custom_call.1']
    #allocation12 [shape = 'u8[4096]{0}', space=vmem, size = 0x1000, scoped, tag = 'output window, operand 0, single buffered']
    %10 = vsyncpa [#allocation5], 0
    %11 = vsyncpa [#allocation8], 0
    %12 = vsyncpa [#allocation11], 0
    %13 = vsyncpa [#allocation6], 0
    // Predicated region
    $region2: #{tpu_custom_call.1} parent=1 // pred_check
      _
    $region3: #{tpu_custom_call.1} parent=1 // pred_check_branch
      %15 = sbr.rel (0) target = $region5
    $region4: #{tpu_custom_call.1} parent=1 // pred_region
      %17 = vsyncadd [#allocation5], 0
      %s19 = sshll.u32 %s0, 4
      %s20 = int_to_ptr.hbm [resolvable:$true] %s19
      %s21 = sshll.u32 [#allocation4], 4
      %s22 = int_to_ptr.vmem [resolvable:$true] %s21
      %24 = dma.hbm_to_vmem [thread:$0]  %s20, 64, %s22, [#allocation5]
    $region5: #{tpu_custom_call.1} parent=1 // pred_fallthru
      _
    // Predicated region
    $region6: #{tpu_custom_call.1} parent=1 // pred_check
      _
    $region7: #{tpu_custom_call.1} parent=1 // pred_check_branch
      %26 = sbr.rel (0) target = $region9
    $region8: #{tpu_custom_call.1} parent=1 // pred_region
      %28 = vsyncadd [#allocation8], 0
      %s29 = sshll.u32 %s1, 4
      %s30 = int_to_ptr.hbm [resolvable:$true] %s29
      %s31 = sshll.u32 [#allocation7], 4
      %s32 = int_to_ptr.vmem [resolvable:$true] %s31
      %37 = dma.hbm_to_vmem [thread:$0]  %s30, 1024, %s32, [#allocation8], 64, 64, 4
    $region9: #{tpu_custom_call.1} parent=1 // pred_fallthru
      _
    // Predicated region
    $region10: #{tpu_custom_call.1} parent=1 // pred_check
      _
    $region11: #{tpu_custom_call.1} parent=1 // pred_check_branch
      %39 = sbr.rel (0) target = $region13
    $region12: #{tpu_custom_call.1} parent=1 // pred_region
      _
    $region13: #{tpu_custom_call.1} parent=1 // pred_fallthru
      _
    // Predicated region
    $region14: #{tpu_custom_call.1} parent=1 // pred_check
      _
    $region15: #{tpu_custom_call.1} parent=1 // pred_check_branch
      %41 = sbr.rel (0) target = $region17
    $region16: #{tpu_custom_call.1} parent=1 // pred_region
      %43 = vsyncadd [#allocation8], 0
      %s44 = sshll.u32 %s3, 4
      %s45 = int_to_ptr.hbm [resolvable:$true] %s44
      %s46 = sshll.u32 [#allocation9], 4
      %s47 = int_to_ptr.vmem [resolvable:$true] %s46
      %52 = dma.hbm_to_vmem [thread:$0]  %s45, 1024, %s47, [#allocation8], 64, 64, 4
    $region17: #{tpu_custom_call.1} parent=1 // pred_fallthru
      _
    // Predicated region
    $region18: #{tpu_custom_call.1} parent=1 // pred_check
      _
    $region19: #{tpu_custom_call.1} parent=1 // pred_check_branch
      %54 = sbr.rel (0) target = $region21
    $region20: #{tpu_custom_call.1} parent=1 // pred_region
      %56 = vsyncadd [#allocation11], 0
      %s57 = sshll.u32 %s4, 4
      %s58 = int_to_ptr.hbm [resolvable:$true] %s57
      %s59 = sshll.u32 [#allocation10], 4
      %s60 = int_to_ptr.vmem [resolvable:$true] %s59
      %65 = dma.hbm_to_vmem [thread:$0]  %s58, 1024, %s60, [#allocation11], 64, 64, 4
    $region21: #{tpu_custom_call.1} parent=1 // pred_fallthru
      _
    // Predicated region
    $region22: #{tpu_custom_call.1} parent=1 // pred_check
      _
    $region23: #{tpu_custom_call.1} parent=1 // pred_check_branch
      %67 = sbr.rel (0) target = $region25
    $region24: #{tpu_custom_call.1} parent=1 // pred_region
      %69 = dma.done [#allocation5], 64
    $region25: #{tpu_custom_call.1} parent=1 // pred_fallthru
      _
    // Predicated region
    $region26: #{tpu_custom_call.1} parent=1 // pred_check
      _
    $region27: #{tpu_custom_call.1} parent=1 // pred_check_branch
      %71 = sbr.rel (0) target = $region29
    $region28: #{tpu_custom_call.1} parent=1 // pred_region
      %73 = dma.done [#allocation8], 1024
    $region29: #{tpu_custom_call.1} parent=1 // pred_fallthru
      _
    // Predicated region
    $region30: #{tpu_custom_call.1} parent=1 // pred_check
      _
    $region31: #{tpu_custom_call.1} parent=1 // pred_check_branch
      %75 = sbr.rel (0) target = $region33
    $region32: #{tpu_custom_call.1} parent=1 // pred_region
      %77 = dma.done [#allocation8], 1024
    $region33: #{tpu_custom_call.1} parent=1 // pred_fallthru
      _
    // Predicated region
    $region34: #{tpu_custom_call.1} parent=1 // pred_check
      _
    $region35: #{tpu_custom_call.1} parent=1 // pred_check_branch
      %79 = sbr.rel (0) target = $region37
    $region36: #{tpu_custom_call.1} parent=1 // pred_region
      %81 = dma.done [#allocation11], 1024
    $region37: #{tpu_custom_call.1} parent=1 // pred_fallthru
      _
    %p82 = scmp.eq.s32.totalorder 0, 0
    // Predicated region
    $region38: #{tpu_custom_call.1} parent=1 // pred_check
      %p83 = pneg %p82
    $region39: #{tpu_custom_call.1} parent=1 // pred_check_branch
      %85 = sbr.rel (%p83) target = $region41
    $region40: #{tpu_custom_call.1} parent=1 // pred_region
      %v86 = vld [vmem:[%s2] sm:$0x1]
      %v88 = vperm.slane %v86, 0
      %90 = vst [vmem:[#allocation2] sm:$0xff] %v88
      %91 = vst [vmem:[#allocation3] sm:$0xff] 0.0
    $region41: #{tpu_custom_call.1} parent=1 // pred_fallthru
      _
    %v92 = vld [vmem:[#allocation4] sm:$0xf]
    %v93 = vld [vmem:[#allocation2] sm:$0xff]
    %v94 = vld [vmem:[#allocation7] sm:$0xf]
    %v95 = vld [vmem:[#allocation7 + $0x4] sm:$0xf]
    %v96 = vld [vmem:[#allocation7 + $0x8] sm:$0xf]
    %v97 = vld [vmem:[#allocation7 + $0xc] sm:$0xf]
    %v98 = vld [vmem:[#allocation7 + $0x10] sm:$0xf]
    %v99 = vld [vmem:[#allocation7 + $0x14] sm:$0xf]
    %v100 = vld [vmem:[#allocation7 + $0x18] sm:$0xf]
    %v101 = vld [vmem:[#allocation7 + $0x1c] sm:$0xf]
    %v102 = vld [vmem:[#allocation7 + $0x20] sm:$0xf]
    %v103 = vld [vmem:[#allocation7 + $0x24] sm:$0xf]
    %v104 = vld [vmem:[#allocation7 + $0x28] sm:$0xf]
    %v105 = vld [vmem:[#allocation7 + $0x2c] sm:$0xf]
    %v106 = vld [vmem:[#allocation7 + $0x30] sm:$0xf]
    %v107 = vld [vmem:[#allocation7 + $0x34] sm:$0xf]
    %v108 = vld [vmem:[#allocation7 + $0x38] sm:$0xf]
    %v109 = vld [vmem:[#allocation7 + $0x3c] sm:$0xf]
    %v126 = vunpack.c.l.b16 %v94
    %v127 = vunpack.c.l.b16 %v95
    %v128 = vunpack.c.l.b16 %v96
    %v129 = vunpack.c.l.b16 %v97
    %v130 = vunpack.c.l.b16 %v98
    %v131 = vunpack.c.l.b16 %v99
    %v132 = vunpack.c.l.b16 %v100
    %v133 = vunpack.c.l.b16 %v101
    %v134 = vunpack.c.l.b16 %v102
    %v135 = vunpack.c.l.b16 %v103
    %v136 = vunpack.c.l.b16 %v104
    %v137 = vunpack.c.l.b16 %v105
    %v138 = vunpack.c.l.b16 %v106
    %v139 = vunpack.c.l.b16 %v107
    %v140 = vunpack.c.l.b16 %v108
    %v141 = vunpack.c.l.b16 %v109
    %v142 = vpack.c.b16 %v127, %v126
    %v143 = vpack.c.b16 %v129, %v128
    %v144 = vpack.c.b16 %v131, %v130
    %v145 = vpack.c.b16 %v133, %v132
    %v146 = vpack.c.b16 %v135, %v134
    %v147 = vpack.c.b16 %v137, %v136
    %v148 = vpack.c.b16 %v139, %v138
    %v149 = vpack.c.b16 %v141, %v140
    %158 = vmatpush.bf16.xpose.msra.mxu0 %v149
    %159 = vmatpush.bf16.xpose.msra.mxu0 %v148
    %160 = vmatpush.bf16.xpose.msra.mxu0 %v147
    %161 = vmatpush.bf16.xpose.msra.mxu0 %v146
    %162 = vmatpush.bf16.xpose.msra.mxu0 %v145
    %163 = vmatpush.bf16.xpose.msra.mxu0 %v144
    %164 = vmatpush.bf16.xpose.msra.mxu0 %v143
    %165 = vmatpush.bf16.xpose.msra.mxu0 %v142
    %166 = vmatmul.bf16.gmra.mxu0 %v92
    %v167 = vpop.f32.mrf.mxu0
    %v168 = vadd.f32 0.0, %v167
    %v169 = vpop.f32.mrf.mxu0
    %170 = vdwg.mxu0
    %v171 = vadd.f32 %v93, %v168
    %172 = vst [vmem:[#allocation2] sm:$0xff] %v171
    %v173 = vld [vmem:[#allocation3] sm:$0xff]
    %v174 = vld [vmem:[#allocation9] sm:$0xf]
    %v175 = vld [vmem:[#allocation9 + $0x4] sm:$0xf]
    %v176 = vld [vmem:[#allocation9 + $0x8] sm:$0xf]
    %v177 = vld [vmem:[#allocation9 + $0xc] sm:$0xf]
    %v178 = vld [vmem:[#allocation9 + $0x10] sm:$0xf]
    %v179 = vld [vmem:[#allocation9 + $0x14] sm:$0xf]
    %v180 = vld [vmem:[#allocation9 + $0x18] sm:$0xf]
    %v181 = vld [vmem:[#allocation9 + $0x1c] sm:$0xf]
    %v182 = vld [vmem:[#allocation9 + $0x20] sm:$0xf]
    %v183 = vld [vmem:[#allocation9 + $0x24] sm:$0xf]
    %v184 = vld [vmem:[#allocation9 + $0x28] sm:$0xf]
    %v185 = vld [vmem:[#allocation9 + $0x2c] sm:$0xf]
    %v186 = vld [vmem:[#allocation9 + $0x30] sm:$0xf]
    %v187 = vld [vmem:[#allocation9 + $0x34] sm:$0xf]
    %v188 = vld [vmem:[#allocation9 + $0x38] sm:$0xf]
    %v189 = vld [vmem:[#allocation9 + $0x3c] sm:$0xf]
    %v206 = vunpack.c.l.b16 %v174
    %v207 = vunpack.c.l.b16 %v175
    %v208 = vunpack.c.l.b16 %v176
    %v209 = vunpack.c.l.b16 %v177
    %v210 = vunpack.c.l.b16 %v178
    %v211 = vunpack.c.l.b16 %v179
    %v212 = vunpack.c.l.b16 %v180
    %v213 = vunpack.c.l.b16 %v181
    %v214 = vunpack.c.l.b16 %v182
    %v215 = vunpack.c.l.b16 %v183
    %v216 = vunpack.c.l.b16 %v184
    %v217 = vunpack.c.l.b16 %v185
    %v218 = vunpack.c.l.b16 %v186
    %v219 = vunpack.c.l.b16 %v187
    %v220 = vunpack.c.l.b16 %v188
    %v221 = vunpack.c.l.b16 %v189
    %v222 = vpack.c.b16 %v207, %v206
    %v223 = vpack.c.b16 %v209, %v208
    %v224 = vpack.c.b16 %v211, %v210
    %v225 = vpack.c.b16 %v213, %v212
    %v226 = vpack.c.b16 %v215, %v214
    %v227 = vpack.c.b16 %v217, %v216
    %v228 = vpack.c.b16 %v219, %v218
    %v229 = vpack.c.b16 %v221, %v220
    %238 = vmatpush.bf16.xpose.msra.mxu0 %v229
    %239 = vmatpush.bf16.xpose.msra.mxu0 %v228
    %240 = vmatpush.bf16.xpose.msra.mxu0 %v227
    %241 = vmatpush.bf16.xpose.msra.mxu0 %v226
    %242 = vmatpush.bf16.xpose.msra.mxu0 %v225
    %243 = vmatpush.bf16.xpose.msra.mxu0 %v224
    %244 = vmatpush.bf16.xpose.msra.mxu0 %v223
    %245 = vmatpush.bf16.xpose.msra.mxu0 %v222
    %246 = vmatmul.bf16.gmra.mxu0 %v92
    %v247 = vpop.f32.mrf.mxu0
    %v248 = vadd.f32 0.0, %v247
    %v249 = vpop.f32.mrf.mxu0
    %250 = vdwg.mxu0
    %v251 = vadd.f32 %v173, %v248
    %252 = vst [vmem:[#allocation3] sm:$0xff] %v251
    // Predicated region
    $region42: #{tpu_custom_call.1} parent=1 // pred_check
      %p253 = pneg %p82
    $region43: #{tpu_custom_call.1} parent=1 // pred_check_branch
      %255 = sbr.rel (%p253) target = $region45
    $region44: #{tpu_custom_call.1} parent=1 // pred_region
      %v256 = vld [vmem:[#allocation3] sm:$0xff]
      %v257 = vpack.c.bf16 %v256, %v256
      %v258 = vld [vmem:[#allocation10] sm:$0xf]
      %v259 = vld [vmem:[#allocation10 + $0x4] sm:$0xf]
      %v260 = vld [vmem:[#allocation10 + $0x8] sm:$0xf]
      %v261 = vld [vmem:[#allocation10 + $0xc] sm:$0xf]
      %v262 = vld [vmem:[#allocation10 + $0x10] sm:$0xf]
      %v263 = vld [vmem:[#allocation10 + $0x14] sm:$0xf]
      %v264 = vld [vmem:[#allocation10 + $0x18] sm:$0xf]
      %v265 = vld [vmem:[#allocation10 + $0x1c] sm:$0xf]
      %v266 = vld [vmem:[#allocation10 + $0x20] sm:$0xf]
      %v267 = vld [vmem:[#allocation10 + $0x24] sm:$0xf]
      %v268 = vld [vmem:[#allocation10 + $0x28] sm:$0xf]
      %v269 = vld [vmem:[#allocation10 + $0x2c] sm:$0xf]
      %v270 = vld [vmem:[#allocation10 + $0x30] sm:$0xf]
      %v271 = vld [vmem:[#allocation10 + $0x34] sm:$0xf]
      %v272 = vld [vmem:[#allocation10 + $0x38] sm:$0xf]
      %v273 = vld [vmem:[#allocation10 + $0x3c] sm:$0xf]
      %v290 = vunpack.c.l.b16 %v258
      %v291 = vunpack.c.l.b16 %v259
      %v292 = vunpack.c.l.b16 %v260
      %v293 = vunpack.c.l.b16 %v261
      %v294 = vunpack.c.l.b16 %v262
      %v295 = vunpack.c.l.b16 %v263
      %v296 = vunpack.c.l.b16 %v264
      %v297 = vunpack.c.l.b16 %v265
      %v298 = vunpack.c.l.b16 %v266
      %v299 = vunpack.c.l.b16 %v267
      %v300 = vunpack.c.l.b16 %v268
      %v301 = vunpack.c.l.b16 %v269
      %v302 = vunpack.c.l.b16 %v270
      %v303 = vunpack.c.l.b16 %v271
      %v304 = vunpack.c.l.b16 %v272
      %v305 = vunpack.c.l.b16 %v273
      %v306 = vpack.c.b16 %v291, %v290
      %v307 = vpack.c.b16 %v293, %v292
      %v308 = vpack.c.b16 %v295, %v294
      %v309 = vpack.c.b16 %v297, %v296
      %v310 = vpack.c.b16 %v299, %v298
      %v311 = vpack.c.b16 %v301, %v300
      %v312 = vpack.c.b16 %v303, %v302
      %v313 = vpack.c.b16 %v305, %v304
      %322 = vmatpush.bf16.xpose.msra.mxu0 %v313
      %323 = vmatpush.bf16.xpose.msra.mxu0 %v312
      %324 = vmatpush.bf16.xpose.msra.mxu0 %v311
      %325 = vmatpush.bf16.xpose.msra.mxu0 %v310
      %326 = vmatpush.bf16.xpose.msra.mxu0 %v309
      %327 = vmatpush.bf16.xpose.msra.mxu0 %v308
      %328 = vmatpush.bf16.xpose.msra.mxu0 %v307
      %329 = vmatpush.bf16.xpose.msra.mxu0 %v306
      %330 = vmatmul.bf16.gmra.mxu0 %v257
      %v331 = vpop.f32.mrf.mxu0
      %v332 = vadd.f32 0.0, %v331
      %v333 = vpop.f32.mrf.mxu0
      %334 = vdwg.mxu0
      %v335 = vld [vmem:[#allocation2] sm:$0xff]
      %v336 = vadd.f32 %v335, %v332
      %337 = vst [vmem:[#allocation12] sm:$0xff] %v336
    $region45: #{tpu_custom_call.1} parent=1 // pred_fallthru
      _
    // Predicated region
    $region46: #{tpu_custom_call.1} parent=1 // pred_check
      _
    $region47: #{tpu_custom_call.1} parent=1 // pred_check_branch
      %339 = sbr.rel (0) target = $region49
    $region48: #{tpu_custom_call.1} parent=1 // pred_region
      %341 = vsyncadd [#allocation6], 0
      %s343 = sshll.u32 [#allocation12], 4
      %s344 = int_to_ptr.vmem [resolvable:$true] %s343
      %s345 = sshll.u32 %s5, 4
      %s346 = int_to_ptr.hbm [resolvable:$true] %s345
      %348 = dma.vmem_to_hbm [thread:$0]  %s344, 128, %s346, [#allocation6]
    $region49: #{tpu_custom_call.1} parent=1 // pred_fallthru
      _
    // Predicated region
    $region50: #{tpu_custom_call.1} parent=1 // pred_check
      _
    $region51: #{tpu_custom_call.1} parent=1 // pred_check_branch
      %350 = sbr.rel (0) target = $region53
    $region52: #{tpu_custom_call.1} parent=1 // pred_region
      %352 = dma.done [#allocation6], 128
    $region53: #{tpu_custom_call.1} parent=1 // pred_fallthru
      _
    %353 = vsyncpa [#allocation5], 1
    %354 = vsyncpa [#allocation8], 1
    %355 = vsyncpa [#allocation11], 1
    %356 = vsyncpa [#allocation6], 1

</llo_original>
